<compile_context>
chip_gen: v6e
topology: v6e:2x2x1
jax: 0.10.0
libtpu: 0.0.40
codegen_flags: <defaults>
</compile_context>

<pallas_src>
import functools
import math

import jax
import jax.numpy as jnp
from jax.experimental import pallas as pl
from jax.experimental.pallas import tpu as pltpu


_INV_LN10 = 0.43429448190325176  # 1 / ln(10)


# ----------------------------- kernels -------------------------------------


def _sdsdr_full_t_kernel(x_ref, y_ref, out_ref, *, eps, zero_mean, n_rows,
                         tile_r, mask_rows):
    """One row-tile per grid step; the full time axis fits in the block."""
    x = x_ref[...].astype(jnp.float32)            # (tile_r, T)
    y = y_ref[...].astype(jnp.float32)

    if zero_mean:
        x = x - jnp.mean(x, axis=-1, keepdims=True)
        y = y - jnp.mean(y, axis=-1, keepdims=True)

    s_xy = jnp.sum(x * y, axis=-1, keepdims=True)  # (tile_r, 1)
    s_yy = jnp.sum(y * y, axis=-1, keepdims=True)
    s_xx = jnp.sum(x * x, axis=-1, keepdims=True)
    # sum((x-y)^2) without materializing the residual tile.
    s_rr = jnp.maximum(s_xx - 2.0 * s_xy + s_yy, 0.0)

    alpha = s_xy / (s_yy + eps)
    num = alpha * alpha * s_yy                     # == sum(scaled_target**2)
    neg = -(10.0 * _INV_LN10 * jnp.log(num / (s_rr + eps) + eps))

    if mask_rows:
        # Mask ghost rows of the partial last tile (inputs are NOT padded).
        i = pl.program_id(0)
        rows = i * tile_r + jax.lax.broadcasted_iota(jnp.int32, (tile_r, 1), 0)
        neg = jnp.where(rows < n_rows, neg, 0.0)
    out_ref[...] = neg.astype(out_ref.dtype)


def _sdsdr_t_tiled_kernel(x_ref, y_ref, out_ref,
                          sx_ref, sy_ref, sxy_ref, syy_ref, sxx_ref,
                          *, eps, zero_mean, n_rows, n_cols, tile_r, tile_t,
                          mask_rows, mask_cols):
    """Long-T path: grid = (row_tiles, t_tiles); raw moments accumulated in
    VMEM scratch across the (inner, 'arbitrary') T axis, finalize on last."""
    i = pl.program_id(0)
    j = pl.program_id(1)
    nj = pl.num_programs(1)

    @pl.when(j == 0)
    def _():
        if zero_mean:
            sx_ref[...] = jnp.zeros_like(sx_ref)
            sy_ref[...] = jnp.zeros_like(sy_ref)
        sxy_ref[...] = jnp.zeros_like(sxy_ref)
        syy_ref[...] = jnp.zeros_like(syy_ref)
        sxx_ref[...] = jnp.zeros_like(sxx_ref)

    x = x_ref[...].astype(jnp.float32)             # (tile_r, tile_t)
    y = y_ref[...].astype(jnp.float32)

    def accumulate(xv, yv):
        if zero_mean:
            sx_ref[...] += jnp.sum(xv, axis=-1, keepdims=True)
            sy_ref[...] += jnp.sum(yv, axis=-1, keepdims=True)
        sxy_ref[...] += jnp.sum(xv * yv, axis=-1, keepdims=True)
        syy_ref[...] += jnp.sum(yv * yv, axis=-1, keepdims=True)
        sxx_ref[...] += jnp.sum(xv * xv, axis=-1, keepdims=True)

    if mask_cols:
        # Only the last T tile overhangs; pay the iota+mask only there.
        @pl.when(j < nj - 1)
        def _():
            accumulate(x, y)

        @pl.when(j == nj - 1)
        def _():
            cols = j * tile_t + jax.lax.broadcasted_iota(
                jnp.int32, (1, tile_t), 1)
            cmask = cols < n_cols
            accumulate(jnp.where(cmask, x, 0.0), jnp.where(cmask, y, 0.0))
    else:
        accumulate(x, y)

    @pl.when(j == nj - 1)
    def _():
        s_xy = sxy_ref[...]
        s_yy = syy_ref[...]
        s_xx = sxx_ref[...]
        if zero_mean:
            t_f = jnp.float32(n_cols)
            s_x = sx_ref[...]
            s_y = sy_ref[...]
            s_xy = s_xy - s_x * s_y / t_f
            s_yy = jnp.maximum(s_yy - s_y * s_y / t_f, 0.0)
            s_xx = jnp.maximum(s_xx - s_x * s_x / t_f, 0.0)
        s_rr = jnp.maximum(s_xx - 2.0 * s_xy + s_yy, 0.0)
        alpha = s_xy / (s_yy + eps)
        num = alpha * alpha * s_yy
        neg = -(10.0 * _INV_LN10 * jnp.log(num / (s_rr + eps) + eps))
        if mask_rows:
            rows = i * tile_r + jax.lax.broadcasted_iota(
                jnp.int32, (tile_r, 1), 0)
            neg = jnp.where(rows < n_rows, neg, 0.0)
        out_ref[...] = neg.astype(out_ref.dtype)


# ----------------------------- wrapper --------------------------------------


def _cdiv(a, b):
    return -(-a // b)


def _round_down(v, m):
    return max(m, (v // m) * m)


def _round_up(v, m):
    return _cdiv(v, m) * m


def _sublane_multiple(dtype):
    """Sublane packing multiple: 8 for 4-byte, 16 for 2-byte, 32 for 1-byte."""
    return max(8, 32 // int(jnp.dtype(dtype).itemsize))


def _vmem_budget_and_limit():
    """Per-generation VMEM working-set budget + explicit scoped-VMEM limit.

    v7x (64 MiB/TC): budget 24 MiB, limit 48 MiB.
    v5e/v6e (128 MiB): budget 48 MiB, limit 64 MiB.
    """
    phys = 64 * 1024 * 1024  # conservative fallback (v7x has 64 MiB / TC)
    try:
        phys = int(pltpu.get_tpu_info().vmem_capacity_bytes)
    except Exception:
        pass
    budget = min(phys * 3 // 8, 48 * 1024 * 1024)
    limit = min(phys * 3 // 4, 64 * 1024 * 1024)
    return budget, limit


# Minimum grid steps on the row axis (pipelining + 2 TCs on v7x).
_MIN_GRID_STEPS = 4


def sdsdr_loss(inputs, target, zero_mean=True, eps=1e-8, reduction="mean",
               tile_r=None, tile_t=None, max_tile_r=None):
    """Negative SD-SDR loss. inputs/target: (batch, nchs, ..., T)."""
    assert inputs.shape == target.shape
    assert inputs.ndim >= 1
    lead = inputs.shape[:-1]
    T = inputs.shape[-1]
    R = int(math.prod(lead)) if lead else 1

    x = inputs.reshape(R, T)
    y = target.reshape(R, T)

    budget, vmem_limit = _vmem_budget_and_limit()
    itemsize = int(jnp.dtype(inputs.dtype).itemsize)
    sub = _sublane_multiple(inputs.dtype)

    # VMEM per row of a full-T block:
    #   2 inputs x 2 pipeline buffers x itemsize   (auto double-buffered DMA)
    # + ~5 float32 elementwise temporaries inside the kernel body
    per_row = (2 * 2 * itemsize + 5 * 4) * T
    cap_rows = budget // per_row

    # Switch to the T-tiled moment kernel early enough that the full-T path
    # never runs with sliver row tiles (poor sublane/grid utilization).
    use_t_tiling = ((tile_t is not None) and (tile_t < T)) or (cap_rows < 64)

    if not use_t_tiling:
        # -------- common path: full T per block, big row tiles ---------------
        if tile_r is None:
            if R < _MIN_GRID_STEPS * sub:
                tile_r = R                       # tiny problem: one tile
            else:
                cap = cap_rows if max_tile_r is None else min(cap_rows,
                                                              max_tile_r)
                # Biggest tile that still leaves >= _MIN_GRID_STEPS grid steps.
                tile_r = min(cap, R // _MIN_GRID_STEPS)
                tile_r = _round_down(tile_r, sub)
                nt = _cdiv(R, tile_r)
                if nt > 1 and nt % 2 == 1:
                    # Prefer an even number of row tiles (v7x: 2 TensorCores).
                    alt = _round_up(_cdiv(R, nt + 1), sub)
                    if sub <= alt <= tile_r and _cdiv(R, alt) % 2 == 0:
                        tile_r = alt
        tile_r = min(tile_r, R)
        if tile_r < R and tile_r % sub != 0:
            tile_r = _round_down(tile_r, sub)
        num_tiles = _cdiv(R, tile_r)
        mask_rows = (R % tile_r) != 0

        out = pl.pallas_call(
            functools.partial(_sdsdr_full_t_kernel, eps=eps,
                              zero_mean=zero_mean, n_rows=R, tile_r=tile_r,
                              mask_rows=mask_rows),
            out_shape=jax.ShapeDtypeStruct((num_tiles * tile_r, 1),
                                           jnp.float32),
            grid_spec=pltpu.PrefetchScalarGridSpec(
                num_scalar_prefetch=0,
                grid=(num_tiles,),
                in_specs=[pl.BlockSpec((tile_r, T), lambda i: (i, 0)),
                          pl.BlockSpec((tile_r, T), lambda i: (i, 0))],
                out_specs=pl.BlockSpec((tile_r, 1), lambda i: (i, 0)),
            ),
            compiler_params=pltpu.CompilerParams(
                dimension_semantics=("parallel",),
                vmem_limit_bytes=vmem_limit),
        )(x, y)
    else:
        # -------- long-T path: tile T, accumulate moments in VMEM scratch ----
        if tile_r is None:
            tile_r = min(R, 256)
        if tile_r >= R:
            tile_r = R
        else:
            tile_r = _round_down(tile_r, sub)
        per_col = (2 * 2 * itemsize + 5 * 4) * tile_r
        if tile_t is None:
            tile_t = max(128, _round_down(budget // per_col, 128))
        if tile_t >= T:
            tile_t = T
        else:
            tile_t = max(128, _round_down(tile_t, 128))
        num_row_tiles = _cdiv(R, tile_r)
        num_t_tiles = _cdiv(T, tile_t)
        mask_rows = (R % tile_r) != 0
        mask_cols = (T % tile_t) != 0

        out = pl.pallas_call(
            functools.partial(_sdsdr_t_tiled_kernel, eps=eps,
                              zero_mean=zero_mean, n_rows=R, n_cols=T,
                              tile_r=tile_r, tile_t=tile_t,
                              mask_rows=mask_rows, mask_cols=mask_cols),
            out_shape=jax.ShapeDtypeStruct((num_row_tiles * tile_r, 1),
                                           jnp.float32),
            grid_spec=pltpu.PrefetchScalarGridSpec(
                num_scalar_prefetch=0,
                grid=(num_row_tiles, num_t_tiles),
                in_specs=[pl.BlockSpec((tile_r, tile_t), lambda i, j: (i, j)),
                          pl.BlockSpec((tile_r, tile_t), lambda i, j: (i, j))],
                out_specs=pl.BlockSpec((tile_r, 1), lambda i, j: (i, 0)),
                scratch_shapes=[pltpu.VMEM((tile_r, 1), jnp.float32)] * 5,
            ),
            compiler_params=pltpu.CompilerParams(
                dimension_semantics=("parallel", "arbitrary"),
                vmem_limit_bytes=vmem_limit),
        )(x, y)

    # Ghost rows were masked to exactly 0 in-kernel, so the reduction over the
    # whole (tile-padded) slab is exact; no jnp.pad of the inputs was needed.
    if reduction == "mean":
        return jnp.sum(out) / R
    if reduction == "sum":
        return jnp.sum(out)
    return out[:R, 0].reshape(lead)


# ----------------------------- reference ------------------------------------


def sdsdr_loss_ref(inputs, target, zero_mean=True, eps=1e-8, reduction="mean"):
    x = inputs.astype(jnp.float32)
    y = target.astype(jnp.float32)
    if zero_mean:
        x = x - jnp.mean(x, axis=-1, keepdims=True)
        y = y - jnp.mean(y, axis=-1, keepdims=True)
    alpha = jnp.sum(x * y, axis=-1) / (jnp.sum(y * y, axis=-1) + eps)
    scaled_target = y * alpha[..., None]
    res = x - y
    losses = 10.0 * jnp.log10(
        jnp.sum(scaled_target ** 2, axis=-1)
        / (jnp.sum(res ** 2, axis=-1) + eps) + eps)
    if reduction == "mean":
        losses = jnp.mean(losses)
    elif reduction == "sum":
        losses = jnp.sum(losses)
    return -losses


# ----------------------------- main ------------------------------------------


if __name__ == "__main__":
    key = jax.random.PRNGKey(0)
    k1, k2, k3, k4, k5, k6, k7, k8 = jax.random.split(key, 8)

    batch, nchs, T = 2, 4, 256
    x1 = jax.random.normal(k1, (batch, nchs, T), dtype=jnp.float32)
    y1 = jax.random.normal(k2, (batch, nchs, T), dtype=jnp.float32)

    # Odd row count (3*7=21): exercises the partial row tile + in-kernel mask.
    x2 = jax.random.normal(k3, (3, 7, T), dtype=jnp.float32)
    y2 = jax.random.normal(k4, (3, 7, T), dtype=jnp.float32)

    # Enough rows (4*16=64) for the auto multi-tile (>=4 steps) full-T grid.
    x3 = jax.random.normal(k5, (4, 16, T), dtype=jnp.float32)
    y3 = jax.random.normal(k6, (4, 16, T), dtype=jnp.float32)

    # Non-multiple-of-128 time axis: exercises the T-tiled column mask.
    x4 = jax.random.normal(k7, (3, 7, 200), dtype=jnp.float32)
    y4 = jax.random.normal(k8, (3, 7, 200), dtype=jnp.float32)

    ok = True

    # Default (full-T) path, all reductions.
    for reduction in ("mean", "sum", "none"):
        got = jax.block_until_ready(sdsdr_loss(x1, y1, reduction=reduction))
        want = sdsdr_loss_ref(x1, y1, reduction=reduction)
        if not jnp.allclose(got, want, rtol=1e-4, atol=1e-4):
            ok = False
            print(f"MISMATCH full-T ({reduction}): {got} vs {want}")

    # zero_mean=False branch.
    got = jax.block_until_ready(sdsdr_loss(x1, y1, zero_mean=False))
    want = sdsdr_loss_ref(x1, y1, zero_mean=False)
    if not jnp.allclose(got, want, rtol=1e-4, atol=1e-4):
        ok = False
        print(f"MISMATCH zero_mean=False: {got} vs {want}")

    # Auto-chosen multi-step row grid (R=64 -> >= 4 tiles).
    for reduction in ("mean", "none"):
        got = jax.block_until_ready(sdsdr_loss(x3, y3, reduction=reduction))
        want = sdsdr_loss_ref(x3, y3, reduction=reduction)
        if not jnp.allclose(got, want, rtol=1e-4, atol=1e-4):
            ok = False
            print(f"MISMATCH multi-tile ({reduction}): {got} vs {want}")

    # Forced small row tile on a non-multiple row count (masked ghost rows).
    for reduction in ("mean", "none"):
        got = jax.block_until_ready(
            sdsdr_loss(x2, y2, reduction=reduction, tile_r=8))
        want = sdsdr_loss_ref(x2, y2, reduction=reduction)
        if not jnp.allclose(got, want, rtol=1e-4, atol=1e-4):
            ok = False
            print(f"MISMATCH masked rows ({reduction}): {got} vs {want}")

    # Force the long-T (time-tiled, moment-accumulator) kernel on small data.
    for reduction in ("mean", "none"):
        got = jax.block_until_ready(
            sdsdr_loss(x2, y2, reduction=reduction, tile_r=8, tile_t=128))
        want = sdsdr_loss_ref(x2, y2, reduction=reduction)
        if not jnp.allclose(got, want, rtol=5e-4, atol=1e-4):
            ok = False
            print(f"MISMATCH t-tiled ({reduction}): {got} vs {want}")

    # T-tiled kernel with a partial (masked) last column tile.
    for zm in (True, False):
        got = jax.block_until_ready(
            sdsdr_loss(x4, y4, zero_mean=zm, tile_r=8, tile_t=128))
        want = sdsdr_loss_ref(x4, y4, zero_mean=zm)
        if not jnp.allclose(got, want, rtol=5e-4, atol=1e-4):
            ok = False
            print(f"MISMATCH t-tiled col-mask (zero_mean={zm}): {got} vs {want}")

    if ok:
        print("KERNEL_OK")
</pallas_src>

<mosaic_0001>
module attributes {stable_mosaic.version = 11 : i64} {
  func.func @_sdsdr_full_t_kernel(%arg0: i32, %arg1: memref<8x256xf32, #tpu.memory_space<vmem>>, %arg2: memref<8x256xf32, #tpu.memory_space<vmem>>, %arg3: memref<8x1xf32, #tpu.memory_space<vmem>>) attributes {dimension_semantics = [#tpu.dimension_semantics<parallel>], iteration_bounds = array<i64: 1>, scalar_prefetch = 0 : i64, scratch_operands = 0 : i64, tpu.core_type = #tpu.core_type<tc>, window_params = [{transform_indices = @transform_0, window_bounds = array<i64: 8, 256>}, {transform_indices = @transform_1, window_bounds = array<i64: 8, 256>}, {transform_indices = @transform_2, window_bounds = array<i64: 8, 1>}]} {
    %c0 = arith.constant 0 : index
    %c0_0 = arith.constant 0 : index
    %0 = vector.load %arg1[%c0, %c0_0] : memref<8x256xf32, #tpu.memory_space<vmem>>, vector<8x256xf32>
    %c0_1 = arith.constant 0 : index
    %c0_2 = arith.constant 0 : index
    %1 = vector.load %arg2[%c0_1, %c0_2] : memref<8x256xf32, #tpu.memory_space<vmem>>, vector<8x256xf32>
    %cst = arith.constant dense<0.000000e+00> : vector<8xf32>
    %2 = vector.multi_reduction <add>, %0, %cst [1] : vector<8x256xf32> to vector<8xf32>
    %3 = vector.shape_cast %2 : vector<8xf32> to vector<8x1xf32>
    %cst_3 = arith.constant 2.560000e+02 : f32
    %4 = vector.broadcast %cst_3 : f32 to vector<8x1xf32>
    %5 = arith.divf %3, %4 : vector<8x1xf32>
    %6 = vector.broadcast %5 : vector<8x1xf32> to vector<8x256xf32>
    %7 = arith.subf %0, %6 : vector<8x256xf32>
    %cst_4 = arith.constant dense<0.000000e+00> : vector<8xf32>
    %8 = vector.multi_reduction <add>, %1, %cst_4 [1] : vector<8x256xf32> to vector<8xf32>
    %9 = vector.shape_cast %8 : vector<8xf32> to vector<8x1xf32>
    %cst_5 = arith.constant 2.560000e+02 : f32
    %10 = vector.broadcast %cst_5 : f32 to vector<8x1xf32>
    %11 = arith.divf %9, %10 : vector<8x1xf32>
    %12 = vector.broadcast %11 : vector<8x1xf32> to vector<8x256xf32>
    %13 = arith.subf %1, %12 : vector<8x256xf32>
    %14 = arith.mulf %7, %13 : vector<8x256xf32>
    %cst_6 = arith.constant dense<0.000000e+00> : vector<8xf32>
    %15 = vector.multi_reduction <add>, %14, %cst_6 [1] : vector<8x256xf32> to vector<8xf32>
    %16 = vector.shape_cast %15 : vector<8xf32> to vector<8x1xf32>
    %17 = arith.mulf %13, %13 : vector<8x256xf32>
    %cst_7 = arith.constant dense<0.000000e+00> : vector<8xf32>
    %18 = vector.multi_reduction <add>, %17, %cst_7 [1] : vector<8x256xf32> to vector<8xf32>
    %19 = vector.shape_cast %18 : vector<8xf32> to vector<8x1xf32>
    %20 = arith.mulf %7, %7 : vector<8x256xf32>
    %cst_8 = arith.constant dense<0.000000e+00> : vector<8xf32>
    %21 = vector.multi_reduction <add>, %20, %cst_8 [1] : vector<8x256xf32> to vector<8xf32>
    %22 = vector.shape_cast %21 : vector<8xf32> to vector<8x1xf32>
    %cst_9 = arith.constant 2.000000e+00 : f32
    %23 = vector.broadcast %cst_9 : f32 to vector<8x1xf32>
    %24 = arith.mulf %23, %16 : vector<8x1xf32>
    %25 = arith.subf %22, %24 : vector<8x1xf32>
    %26 = arith.addf %25, %19 : vector<8x1xf32>
    %cst_10 = arith.constant 0.000000e+00 : f32
    %27 = vector.broadcast %cst_10 : f32 to vector<8x1xf32>
    %28 = arith.maximumf %26, %27 : vector<8x1xf32>
    %cst_11 = arith.constant 9.99999993E-9 : f32
    %29 = vector.broadcast %cst_11 : f32 to vector<8x1xf32>
    %30 = arith.addf %19, %29 : vector<8x1xf32>
    %31 = arith.divf %16, %30 : vector<8x1xf32>
    %32 = arith.mulf %31, %31 : vector<8x1xf32>
    %33 = arith.mulf %32, %19 : vector<8x1xf32>
    %cst_12 = arith.constant 9.99999993E-9 : f32
    %34 = vector.broadcast %cst_12 : f32 to vector<8x1xf32>
    %35 = arith.addf %28, %34 : vector<8x1xf32>
    %36 = arith.divf %33, %35 : vector<8x1xf32>
    %cst_13 = arith.constant 9.99999993E-9 : f32
    %37 = vector.broadcast %cst_13 : f32 to vector<8x1xf32>
    %38 = arith.addf %36, %37 : vector<8x1xf32>
    %39 = math.log %38 : vector<8x1xf32>
    %cst_14 = arith.constant 4.34294462 : f32
    %40 = vector.broadcast %cst_14 : f32 to vector<8x1xf32>
    %41 = arith.mulf %40, %39 : vector<8x1xf32>
    %cst_15 = arith.constant 0.000000e+00 : f32
    %42 = vector.broadcast %cst_15 : f32 to vector<8x1xf32>
    %43 = arith.subf %42, %41 : vector<8x1xf32>
    %c0_16 = arith.constant 0 : index
    %c0_17 = arith.constant 0 : index
    %44 = vector.load %arg3[%c0_16, %c0_17] : memref<8x1xf32, #tpu.memory_space<vmem>>, vector<8x1xf32>
    tpu.vector_store %arg3[%c0_16, %c0_17], %43 {strides = array<i32>} : memref<8x1xf32, #tpu.memory_space<vmem>>, vector<8x1xf32>,
    return
  }
  func.func @transform_0(%arg0: i32) -> (i32, i32) {
    %c0_i32 = arith.constant 0 : i32
    %c0_i32_0 = arith.constant 0 : i32
    return %arg0, %c0_i32 : i32, i32
  }
  func.func @transform_1(%arg0: i32) -> (i32, i32) {
    %c0_i32 = arith.constant 0 : i32
    %c0_i32_0 = arith.constant 0 : i32
    return %arg0, %c0_i32 : i32, i32
  }
  func.func @transform_2(%arg0: i32) -> (i32, i32) {
    %c0_i32 = arith.constant 0 : i32
    %c0_i32_0 = arith.constant 0 : i32
    return %arg0, %c0_i32 : i32, i32
  }
}

</mosaic_0001>

<llo_original>
// kernel: tpu_custom_call.1
$region0: #{tpu_custom_call.1}
  #allocation0 [shape = 'u32[]', space=smem, size = 0x4, offset = 0x4, fixed_abs, tag = 'smem constant byte address 0x4 - core index']
  #allocation1 [shape = 'u32[144,128]{1,0:T(1,128)}', space=vmem, size = 0x12000, scoped, tag = 'internal scratch']
  %s0 = inlined_call_operand.hbm [shape: f32[8,256], index: 0, kind: input, shape index: {}]
  %s1 = inlined_call_operand.hbm [shape: f32[8,256], index: 1, kind: input, shape index: {}]
  %s2 = inlined_call_operand.vmem [shape: f32[8,1], index: 2, kind: output, shape index: {}]
  %s3 = sld [smem:[#allocation0]]
  $region26: #{tpu_custom_call.1} parent=0
    _
  %s5 = ssub.s32 1, %s3
  %s6 = scalar_select 0, %s5, %s3
  $region1: #{tpu_custom_call.1} parent=0
    #allocation2 [shape = 'u8[8192]{0}', space=vmem, size = 0x2000, scoped, tag = 'input window, operand 0, single buffered']
    #allocation3 [shape = 's32[1]{0}', space=sflag, size = 0x4, scoped, tag = 'scoped memory for tpu_custom_call.1']
    #allocation4 [shape = 'u8[8192]{0}', space=vmem, size = 0x2000, scoped, tag = 'input window, operand 1, single buffered']
    #allocation5 [shape = 's32[1]{0}', space=sflag, size = 0x4, scoped, tag = 'scoped memory for tpu_custom_call.1']
    %7 = vsyncpa [#allocation3], 0
    %8 = vsyncpa [#allocation5], 0
    // Predicated region
    $region2: #{tpu_custom_call.1} parent=1 // pred_check
      _
    $region3: #{tpu_custom_call.1} parent=1 // pred_check_branch
      %10 = sbr.rel (0) target = $region5
    $region4: #{tpu_custom_call.1} parent=1 // pred_region
      %s12 = ssub.s32 256, 256
      %13 = vsyncadd [#allocation3], %s12
      %s15 = sshll.u32 [#allocation2], 4
      %s16 = int_to_ptr.vmem [resolvable:$true] %s15
      %18 = dma.hbm_to_vmem [thread:$0]  %s0, 256, %s16, [#allocation3]
    $region5: #{tpu_custom_call.1} parent=1 // pred_fallthru
      _
    // Predicated region
    $region6: #{tpu_custom_call.1} parent=1 // pred_check
      _
    $region7: #{tpu_custom_call.1} parent=1 // pred_check_branch
      %20 = sbr.rel (0) target = $region9
    $region8: #{tpu_custom_call.1} parent=1 // pred_region
      %s22 = ssub.s32 256, 256
      %23 = vsyncadd [#allocation5], %s22
      %s25 = sshll.u32 [#allocation4], 4
      %s26 = int_to_ptr.vmem [resolvable:$true] %s25
      %28 = dma.hbm_to_vmem [thread:$0]  %s1, 256, %s26, [#allocation5]
    $region9: #{tpu_custom_call.1} parent=1 // pred_fallthru
      _
    // Predicated region
    $region10: #{tpu_custom_call.1} parent=1 // pred_check
      _
    $region11: #{tpu_custom_call.1} parent=1 // pred_check_branch
      %30 = sbr.rel (0) target = $region13
    $region12: #{tpu_custom_call.1} parent=1 // pred_region
      %31 = dma.done [#allocation3], 256
    $region13: #{tpu_custom_call.1} parent=1 // pred_fallthru
      _
    // Predicated region
    $region14: #{tpu_custom_call.1} parent=1 // pred_check
      _
    $region15: #{tpu_custom_call.1} parent=1 // pred_check_branch
      %33 = sbr.rel (0) target = $region17
    $region16: #{tpu_custom_call.1} parent=1 // pred_region
      %34 = dma.done [#allocation5], 256
    $region17: #{tpu_custom_call.1} parent=1 // pred_fallthru
      _
    %v35 = vld [vmem:[#allocation2] sm:$0xff]
    %v36 = vld [vmem:[#allocation2 + $0x8] sm:$0xff]
    %v37 = vld [vmem:[#allocation4] sm:$0xff]
    %v38 = vld [vmem:[#allocation4 + $0x8] sm:$0xff]
    %v39 = vadd.f32 %v35, %v36
    %40 = vadd.xlane.f32.xlu0 %v39
    %v41 = vpop.xlane.xlu0 %40
    %v42 = vrcp.pop 256.0
    %v43 = vmul.f32 %v41, %v42
    %v44 = vsub.f32 %v35, %v43
    %v45 = vsub.f32 %v36, %v43
    %v46 = vadd.f32 %v37, %v38
    %47 = vadd.xlane.f32.xlu0 %v46
    %v48 = vpop.xlane.xlu0 %47
    %v49 = vmul.f32 %v48, %v42
    %v50 = vsub.f32 %v37, %v49
    %v51 = vsub.f32 %v38, %v49
    %v52 = vmul.f32 %v44, %v50
    %v53 = vmul.f32 %v45, %v51
    %v54 = vadd.f32 %v52, %v53
    %55 = vadd.xlane.f32.xlu0 %v54
    %v56 = vpop.xlane.xlu0 %55
    %v57 = vmul.f32 %v50, %v50
    %v58 = vmul.f32 %v51, %v51
    %v59 = vadd.f32 %v57, %v58
    %60 = vadd.xlane.f32.xlu0 %v59
    %v61 = vpop.xlane.xlu0 %60
    %v62 = vmul.f32 %v44, %v44
    %v63 = vmul.f32 %v45, %v45
    %v64 = vadd.f32 %v62, %v63
    %65 = vadd.xlane.f32.xlu0 %v64
    %v66 = vpop.xlane.xlu0 %65
    %v67 = vmul.f32 %v56, 2.0
    %v68 = vsub.f32 %v66, %v67
    %v69 = vadd.f32 %v68, %v61
    %v70 = vmax.f32 %v69, 0.0
    %v71 = vadd.f32 %v61, 1e-08
    %v72 = vrcp.pop %v71
    %v73 = vmul.f32 %v56, %v72
    %v74 = vmul.f32 %v73, %v73
    %v75 = vmul.f32 %v74, %v61
    %v76 = vadd.f32 %v70, 1e-08
    %v77 = vrcp.pop %v76
    %v78 = vmul.f32 %v75, %v77
    %v79 = vadd.f32 %v78, 1e-08
    %v80 = vlog2.pop %v79
    %v81 = vmul.f32 %v80, 0.6931472
    %v82 = vmul.f32 %v81, 4.3429446
    %v83 = vsub.f32 0.0, %v82
    %vm84 = vcmask 7168
    %85 = vst.msk [vmem:[%s2] sm:$0xff] %vm84, %v83
    // Predicated region
    $region18: #{tpu_custom_call.1} parent=1 // pred_check
      _
    $region19: #{tpu_custom_call.1} parent=1 // pred_check_branch
      %87 = sbr.rel (0) target = $region21
    $region20: #{tpu_custom_call.1} parent=1 // pred_region
      _
    $region21: #{tpu_custom_call.1} parent=1 // pred_fallthru
      _
    // Predicated region
    $region22: #{tpu_custom_call.1} parent=1 // pred_check
      _
    $region23: #{tpu_custom_call.1} parent=1 // pred_check_branch
      %89 = sbr.rel (0) target = $region25
    $region24: #{tpu_custom_call.1} parent=1 // pred_region
      _
    $region25: #{tpu_custom_call.1} parent=1 // pred_fallthru
      _
    %90 = vsyncpa [#allocation3], 1
    %91 = vsyncpa [#allocation5], 1

</llo_original>
